<compile_context>
chip_gen: v7x
topology: tpu7x:2x2x1
jax: 0.10.0
libtpu: 0.0.40
codegen_flags: <defaults>
</compile_context>

<pallas_src>
import jax
import jax.numpy as jnp
import numpy as np
from jax import lax
from jax.experimental import pallas as pl
from jax.experimental.pallas import tpu as pltpu


# ----------------------------- Pallas kernel ------------------------------- #
def caa_kernel(x_lane_ref, x_rows_ref, x_t_ref,
               wkt_ref, bk_ref, wq_ref, bq_ref, wv_ref, bv_ref,
               alpha_ref, out_ref):
    C, BN = out_ref.shape
    BC = x_rows_ref.shape[0]
    B = BC // C
    N = BN // B

    alpha = alpha_ref[0]                      # hoisted scalar read (SMEM)
    x_lane = x_lane_ref[...]                  # (C, B*N) f32, lane-dense

    # ---- batch-folded projections (bf16 MXU operands, f32 accumulation) ----
    # key:   (B*C, N) @ (N, Nq) -> (B*C, Nq)              [natural MXU form]
    k_all = jnp.maximum(
        jnp.dot(x_rows_ref[...], wkt_ref[...],
                preferred_element_type=jnp.float32) + bk_ref[...], 0.0)
    # query, emitted transposed: (Nq, N) @ (N, B*C) -> (Nq, B*C)  [natural form]
    qT_all = jnp.maximum(
        jnp.dot(wq_ref[...], x_t_ref[...],
                preferred_element_type=jnp.float32) + bq_ref[...], 0.0)
    # value, lane-dense: (C, C) @ (C, B*N) -> (C, B*N)
    v_all = jnp.maximum(
        jnp.dot(wv_ref[...], x_lane.astype(jnp.bfloat16),
                preferred_element_type=jnp.float32) + bv_ref[...], 0.0)

    # ---- per-batch channel affinity (B is tiny & static -> unrolled) ----
    sims = []
    for b in range(B):
        k_b = k_all[b * C:(b + 1) * C, :].astype(jnp.bfloat16)      # (C, Nq)
        qT_b = qT_all[:, b * C:(b + 1) * C].astype(jnp.bfloat16)    # (Nq, C)
        sims.append(jnp.dot(k_b, qT_b, preferred_element_type=jnp.float32))
    sim = jnp.concatenate(sims, axis=0)                             # (B*C, C)

    # softmax(rowmax(sim) - sim) == exp(rowmin(sim) - sim) / rowsum
    e = jnp.exp(jnp.min(sim, axis=-1, keepdims=True) - sim)
    p = e * pl.reciprocal(jnp.sum(e, axis=-1, keepdims=True), approx=True)
    p = p.astype(jnp.bfloat16)                                      # (B*C, C)

    # ---- attention applied to values, assembled lane-dense as (C, B*N) ----
    outs = []
    for b in range(B):
        p_b = p[b * C:(b + 1) * C, :]                               # (C, C)
        v_b = v_all[:, b * N:(b + 1) * N].astype(jnp.bfloat16)      # (C, N)
        outs.append(jnp.dot(p_b, v_b, preferred_element_type=jnp.float32))
    out_att = jnp.concatenate(outs, axis=-1)                        # (C, B*N)

    # residual: alpha * out + x   -> single unmasked 128-lane store
    out_ref[...] = alpha * out_att + x_lane


# ------------------------------ wrapper ------------------------------------ #
def caa_forward(x, wq_eff, bq_eff, wk_eff, bk_eff, wv_eff, bv_eff, alpha):
    """x: (B, C, N) float32. w*_eff / b*_eff are conv+BN folded params."""
    B, C, N = x.shape
    Nq = wq_eff.shape[0]            # = in_pts // 8
    BN, BC = B * N, B * C

    # Layout plumbing (outside the kernel):
    # lane-dense (C, B*N) for value path + residual + output
    x_lane = jnp.transpose(x, (1, 0, 2)).reshape(C, BN)                 # f32
    # row-stacked (B*C, N) for the key projection (bf16 MXU operand)
    x_rows = x.reshape(BC, N).astype(jnp.bfloat16)
    # transposed (N, B*C) for the query projection (bf16 MXU operand)
    x_t = jnp.transpose(x, (2, 0, 1)).reshape(N, BC).astype(jnp.bfloat16)

    wkt = wk_eff.T.astype(jnp.bfloat16)        # (N, Nq)
    wq = wq_eff.astype(jnp.bfloat16)           # (Nq, N)
    wv = wv_eff.astype(jnp.bfloat16)           # (C, C)
    bk = bk_eff.reshape(1, Nq)                 # f32 biases (elementwise in f32)
    bq = bq_eff.reshape(Nq, 1)
    bv = bv_eff.reshape(C, 1)
    alpha_arr = jnp.asarray(alpha, jnp.float32).reshape(1)

    vmem = pl.BlockSpec(memory_space=pltpu.MemorySpace.VMEM)
    smem = pl.BlockSpec(memory_space=pltpu.MemorySpace.SMEM)

    out_lane = pl.pallas_call(
        caa_kernel,
        out_shape=jax.ShapeDtypeStruct((C, BN), jnp.float32),
        in_specs=[vmem,    # x_lane (C, B*N) f32
                  vmem,    # x_rows (B*C, N) bf16
                  vmem,    # x_t    (N, B*C) bf16
                  vmem,    # Wk^T   (N, Nq)  bf16
                  vmem,    # bk     (1, Nq)  f32
                  vmem,    # Wq     (Nq, N)  bf16
                  vmem,    # bq     (Nq, 1)  f32
                  vmem,    # Wv     (C, C)   bf16
                  vmem,    # bv     (C, 1)   f32
                  smem],   # alpha  (1,)     f32
        out_specs=vmem,
        input_output_aliases={0: 0},   # residual writes back into x_lane's buffer
    )(x_lane, x_rows, x_t, wkt, bk, wq, bq, wv, bv, alpha_arr)

    # back to PyTorch layout (B, C, N)
    return jnp.transpose(out_lane.reshape(C, B, N), (1, 0, 2))


# ------------------------ param init + BN folding -------------------------- #
def fold_conv_bn(w, gamma, beta, mean, var, eps=1e-5):
    """Fold bias-free 1x1 Conv1d followed by eval-mode BatchNorm1d."""
    scale = gamma / jnp.sqrt(var + eps)
    w_eff = scale[:, None] * w
    b_eff = beta - scale * mean
    return w_eff, b_eff


def make_params(key, in_dim, in_pts):
    nq = in_pts // 8
    ks = jax.random.split(key, 16)

    def bn_params(k0, k1, k2, k3, n):
        gamma = jax.random.uniform(k0, (n,), jnp.float32, 0.5, 1.5)
        beta = 0.1 * jax.random.normal(k1, (n,), jnp.float32)
        mean = 0.1 * jax.random.normal(k2, (n,), jnp.float32)
        var = jax.random.uniform(k3, (n,), jnp.float32, 0.5, 1.5)
        return gamma, beta, mean, var

    wq = 0.2 * jax.random.normal(ks[0], (nq, in_pts), jnp.float32)
    wk = 0.2 * jax.random.normal(ks[1], (nq, in_pts), jnp.float32)
    wv = 0.2 * jax.random.normal(ks[2], (in_dim, in_dim), jnp.float32)

    bn1 = bn_params(ks[3], ks[4], ks[5], ks[6], nq)
    bn2 = bn_params(ks[7], ks[8], ks[9], ks[10], nq)
    bn3 = bn_params(ks[11], ks[12], ks[13], ks[14], in_dim)

    wq_eff, bq_eff = fold_conv_bn(wq, *bn1)
    wk_eff, bk_eff = fold_conv_bn(wk, *bn2)
    wv_eff, bv_eff = fold_conv_bn(wv, *bn3)

    # PyTorch initializes alpha to 0 (identity mapping); use a nonzero value
    # here so the attention path actually contributes to the output.
    alpha = jnp.float32(0.7)
    return wq_eff, bq_eff, wk_eff, bk_eff, wv_eff, bv_eff, alpha


# --------------------------- pure-JAX reference ----------------------------- #
def _bf16_round(t):
    return t.astype(jnp.bfloat16).astype(jnp.float32)


def caa_reference(x, wq_eff, bq_eff, wk_eff, bk_eff, wv_eff, bv_eff, alpha):
    """Mirrors the kernel's mixed precision (bf16 matmul operands, f32 math)."""
    hi = lax.Precision.HIGHEST
    xb = _bf16_round(x)
    wq, wk, wv = _bf16_round(wq_eff), _bf16_round(wk_eff), _bf16_round(wv_eff)

    pq = jax.nn.relu(jnp.einsum('on,bcn->boc', wq, xb, precision=hi)
                     + bq_eff[None, :, None])                       # (B, Nq, C)
    pk = jax.nn.relu(jnp.einsum('on,bcn->boc', wk, xb, precision=hi)
                     + bk_eff[None, :, None])                       # (B, Nq, C)
    sim = jnp.einsum('boc,bod->bcd', _bf16_round(pk), _bf16_round(pq),
                     precision=hi)                                  # (B, C, C)
    aff = jnp.max(sim, axis=-1, keepdims=True) - sim
    aff = jax.nn.softmax(aff, axis=-1)
    pv = jax.nn.relu(jnp.einsum('oc,bcn->bon', wv, xb, precision=hi)
                     + bv_eff[None, :, None])                       # (B, C, N)
    out = jnp.einsum('bcd,bdn->bcn', _bf16_round(aff), _bf16_round(pv),
                     precision=hi)
    return alpha * out + x


# --------------------------------- main ------------------------------------ #
if __name__ == "__main__":
    B, C, N = 2, 32, 64          # batch, in_dim, in_pts (in_pts % 8 == 0)
    key = jax.random.PRNGKey(0)
    kx, kp = jax.random.split(key)

    x = jax.random.normal(kx, (B, C, N), jnp.float32)
    params = make_params(kp, C, N)

    caa = jax.jit(caa_forward)
    out = jax.block_until_ready(caa(x, *params))

    ref = caa_reference(x, *params)
    # tolerance accounts for bf16 MXU operands + approx EUP reciprocal
    np.testing.assert_allclose(np.asarray(out), np.asarray(ref),
                               rtol=1e-2, atol=1e-2)
    print("KERNEL_OK")
</pallas_src>

<mosaic_0001>
module attributes {stable_mosaic.version = 11 : i64} {
  func.func @caa_kernel(%arg0: memref<32x128xf32, #tpu.memory_space<vmem>>, %arg1: memref<64x64xbf16, #tpu.memory_space<vmem>>, %arg2: memref<64x64xbf16, #tpu.memory_space<vmem>>, %arg3: memref<64x8xbf16, #tpu.memory_space<vmem>>, %arg4: memref<1x8xf32, #tpu.memory_space<vmem>>, %arg5: memref<8x64xbf16, #tpu.memory_space<vmem>>, %arg6: memref<8x1xf32, #tpu.memory_space<vmem>>, %arg7: memref<32x32xbf16, #tpu.memory_space<vmem>>, %arg8: memref<32x1xf32, #tpu.memory_space<vmem>>, %arg9: memref<1xf32, #tpu.memory_space<smem>>, %arg10: memref<32x128xf32, #tpu.memory_space<vmem>>) attributes {dimension_semantics = [], scalar_prefetch = 0 : i64, scratch_operands = 0 : i64, tpu.core_type = #tpu.core_type<tc>} {
    %c0 = arith.constant 0 : index
    %0 = memref.load %arg9[%c0] : memref<1xf32, #tpu.memory_space<smem>>
    %c0_0 = arith.constant 0 : index
    %c0_1 = arith.constant 0 : index
    %1 = vector.load %arg0[%c0_0, %c0_1] : memref<32x128xf32, #tpu.memory_space<vmem>>, vector<32x128xf32>
    %c0_2 = arith.constant 0 : index
    %c0_3 = arith.constant 0 : index
    %2 = vector.load %arg1[%c0_2, %c0_3] : memref<64x64xbf16, #tpu.memory_space<vmem>>, vector<64x64xbf16>
    %c0_4 = arith.constant 0 : index
    %c0_5 = arith.constant 0 : index
    %3 = vector.load %arg3[%c0_4, %c0_5] : memref<64x8xbf16, #tpu.memory_space<vmem>>, vector<64x8xbf16>
    %cst = arith.constant dense<0.000000e+00> : vector<64x8xf32>
    %4 = tpu.matmul %2, %3, %cst {dimension_numbers = #tpu.dot_dimension_numbers<[1], [0], [0], [1], [0, 0, 1, 1], [], []>} : vector<64x64xbf16>, vector<64x8xbf16>, vector<64x8xf32> -> vector<64x8xf32>
    %c0_6 = arith.constant 0 : index
    %c0_7 = arith.constant 0 : index
    %5 = vector.load %arg4[%c0_6, %c0_7] : memref<1x8xf32, #tpu.memory_space<vmem>>, vector<1x8xf32>
    %6 = vector.broadcast %5 : vector<1x8xf32> to vector<64x8xf32>
    %7 = arith.addf %4, %6 : vector<64x8xf32>
    %cst_8 = arith.constant 0.000000e+00 : f32
    %8 = vector.broadcast %cst_8 : f32 to vector<64x8xf32>
    %9 = arith.maximumf %7, %8 : vector<64x8xf32>
    %c0_9 = arith.constant 0 : index
    %c0_10 = arith.constant 0 : index
    %10 = vector.load %arg5[%c0_9, %c0_10] : memref<8x64xbf16, #tpu.memory_space<vmem>>, vector<8x64xbf16>
    %c0_11 = arith.constant 0 : index
    %c0_12 = arith.constant 0 : index
    %11 = vector.load %arg2[%c0_11, %c0_12] : memref<64x64xbf16, #tpu.memory_space<vmem>>, vector<64x64xbf16>
    %cst_13 = arith.constant dense<0.000000e+00> : vector<8x64xf32>
    %12 = tpu.matmul %10, %11, %cst_13 {dimension_numbers = #tpu.dot_dimension_numbers<[1], [0], [0], [1], [0, 0, 1, 1], [], []>} : vector<8x64xbf16>, vector<64x64xbf16>, vector<8x64xf32> -> vector<8x64xf32>
    %c0_14 = arith.constant 0 : index
    %c0_15 = arith.constant 0 : index
    %13 = vector.load %arg6[%c0_14, %c0_15] : memref<8x1xf32, #tpu.memory_space<vmem>>, vector<8x1xf32>
    %14 = vector.broadcast %13 : vector<8x1xf32> to vector<8x64xf32>
    %15 = arith.addf %12, %14 : vector<8x64xf32>
    %cst_16 = arith.constant 0.000000e+00 : f32
    %16 = vector.broadcast %cst_16 : f32 to vector<8x64xf32>
    %17 = arith.maximumf %15, %16 : vector<8x64xf32>
    %c0_17 = arith.constant 0 : index
    %c0_18 = arith.constant 0 : index
    %18 = vector.load %arg7[%c0_17, %c0_18] : memref<32x32xbf16, #tpu.memory_space<vmem>>, vector<32x32xbf16>
    %19 = arith.truncf %1 : vector<32x128xf32> to vector<32x128xbf16>
    %cst_19 = arith.constant dense<0.000000e+00> : vector<32x128xf32>
    %20 = tpu.matmul %18, %19, %cst_19 {dimension_numbers = #tpu.dot_dimension_numbers<[1], [0], [0], [1], [0, 0, 1, 1], [], []>} : vector<32x32xbf16>, vector<32x128xbf16>, vector<32x128xf32> -> vector<32x128xf32>
    %c0_20 = arith.constant 0 : index
    %c0_21 = arith.constant 0 : index
    %21 = vector.load %arg8[%c0_20, %c0_21] : memref<32x1xf32, #tpu.memory_space<vmem>>, vector<32x1xf32>
    %22 = vector.broadcast %21 : vector<32x1xf32> to vector<32x128xf32>
    %23 = arith.addf %20, %22 : vector<32x128xf32>
    %cst_22 = arith.constant 0.000000e+00 : f32
    %24 = vector.broadcast %cst_22 : f32 to vector<32x128xf32>
    %25 = arith.maximumf %23, %24 : vector<32x128xf32>
    %26 = vector.extract_strided_slice %9 {offsets = [0, 0], sizes = [32, 8], strides = [1, 1]} : vector<64x8xf32> to vector<32x8xf32>
    %27 = arith.truncf %26 : vector<32x8xf32> to vector<32x8xbf16>
    %28 = vector.extract_strided_slice %17 {offsets = [0, 0], sizes = [8, 32], strides = [1, 1]} : vector<8x64xf32> to vector<8x32xf32>
    %29 = arith.truncf %28 : vector<8x32xf32> to vector<8x32xbf16>
    %cst_23 = arith.constant dense<0.000000e+00> : vector<32x32xf32>
    %30 = tpu.matmul %27, %29, %cst_23 {dimension_numbers = #tpu.dot_dimension_numbers<[1], [0], [0], [1], [0, 0, 1, 1], [], []>} : vector<32x8xbf16>, vector<8x32xbf16>, vector<32x32xf32> -> vector<32x32xf32>
    %31 = vector.extract_strided_slice %9 {offsets = [32, 0], sizes = [32, 8], strides = [1, 1]} : vector<64x8xf32> to vector<32x8xf32>
    %32 = arith.truncf %31 : vector<32x8xf32> to vector<32x8xbf16>
    %33 = vector.extract_strided_slice %17 {offsets = [0, 32], sizes = [8, 32], strides = [1, 1]} : vector<8x64xf32> to vector<8x32xf32>
    %34 = arith.truncf %33 : vector<8x32xf32> to vector<8x32xbf16>
    %cst_24 = arith.constant dense<0.000000e+00> : vector<32x32xf32>
    %35 = tpu.matmul %32, %34, %cst_24 {dimension_numbers = #tpu.dot_dimension_numbers<[1], [0], [0], [1], [0, 0, 1, 1], [], []>} : vector<32x8xbf16>, vector<8x32xbf16>, vector<32x32xf32> -> vector<32x32xf32>
    %36 = tpu.concatenate %30, %35 in 0 : vector<32x32xf32>, vector<32x32xf32> -> vector<64x32xf32>
    %cst_25 = arith.constant dense<0x7F800000> : vector<64xf32>
    %37 = vector.multi_reduction <minimumf>, %36, %cst_25 [1] : vector<64x32xf32> to vector<64xf32>
    %38 = vector.shape_cast %37 : vector<64xf32> to vector<64x1xf32>
    %39 = vector.broadcast %38 : vector<64x1xf32> to vector<64x32xf32>
    %40 = arith.subf %39, %36 : vector<64x32xf32>
    %41 = math.exp %40 : vector<64x32xf32>
    %cst_26 = arith.constant dense<0.000000e+00> : vector<64xf32>
    %42 = vector.multi_reduction <add>, %41, %cst_26 [1] : vector<64x32xf32> to vector<64xf32>
    %43 = vector.shape_cast %42 : vector<64xf32> to vector<64x1xf32>
    %44 = tpu.reciprocal %43 {approx = true} : vector<64x1xf32> -> vector<64x1xf32>
    %45 = vector.broadcast %44 : vector<64x1xf32> to vector<64x32xf32>
    %46 = arith.mulf %41, %45 : vector<64x32xf32>
    %47 = arith.truncf %46 : vector<64x32xf32> to vector<64x32xbf16>
    %48 = vector.extract_strided_slice %47 {offsets = [0, 0], sizes = [32, 32], strides = [1, 1]} : vector<64x32xbf16> to vector<32x32xbf16>
    %49 = vector.extract_strided_slice %25 {offsets = [0, 0], sizes = [32, 64], strides = [1, 1]} : vector<32x128xf32> to vector<32x64xf32>
    %50 = arith.truncf %49 : vector<32x64xf32> to vector<32x64xbf16>
    %cst_27 = arith.constant dense<0.000000e+00> : vector<32x64xf32>
    %51 = tpu.matmul %48, %50, %cst_27 {dimension_numbers = #tpu.dot_dimension_numbers<[1], [0], [0], [1], [0, 0, 1, 1], [], []>} : vector<32x32xbf16>, vector<32x64xbf16>, vector<32x64xf32> -> vector<32x64xf32>
    %52 = vector.extract_strided_slice %47 {offsets = [32, 0], sizes = [32, 32], strides = [1, 1]} : vector<64x32xbf16> to vector<32x32xbf16>
    %53 = vector.extract_strided_slice %25 {offsets = [0, 64], sizes = [32, 64], strides = [1, 1]} : vector<32x128xf32> to vector<32x64xf32>
    %54 = arith.truncf %53 : vector<32x64xf32> to vector<32x64xbf16>
    %cst_28 = arith.constant dense<0.000000e+00> : vector<32x64xf32>
    %55 = tpu.matmul %52, %54, %cst_28 {dimension_numbers = #tpu.dot_dimension_numbers<[1], [0], [0], [1], [0, 0, 1, 1], [], []>} : vector<32x32xbf16>, vector<32x64xbf16>, vector<32x64xf32> -> vector<32x64xf32>
    %56 = tpu.concatenate %51, %55 in 1 : vector<32x64xf32>, vector<32x64xf32> -> vector<32x128xf32>
    %57 = vector.broadcast %0 : f32 to vector<32x128xf32>
    %58 = arith.mulf %57, %56 : vector<32x128xf32>
    %59 = arith.addf %58, %1 : vector<32x128xf32>
    %c0_29 = arith.constant 0 : index
    %c0_30 = arith.constant 0 : index
    %60 = vector.load %arg10[%c0_29, %c0_30] : memref<32x128xf32, #tpu.memory_space<vmem>>, vector<32x128xf32>
    tpu.vector_store %arg10[%c0_29, %c0_30], %59 {strides = array<i32>} : memref<32x128xf32, #tpu.memory_space<vmem>>, vector<32x128xf32>,
    return
  }
}

</mosaic_0001>

<llo_original>
// kernel: caa_forward.1
$region0: #{caa_forward.1}
  #allocation0 [shape = 'u32[]', space=smem, size = 0x4, offset = 0x4, fixed_abs, tag = 'smem constant byte address 0x4 - core index']
  #allocation1 [shape = 'u32[144,128]{1,0:T(1,128)}', space=vmem, size = 0x12000, scoped, tag = 'internal scratch']
  #allocation2 [shape = 'f32[1]{0:T(128)S(6)}', space=smem, size = 0x200, scoped, tag = 'scoped memory for caa_forward.1']
  %s0 = inlined_call_operand.vmem [shape: f32[32,128], index: 0, kind: input, shape index: {}, may-alias: {0,10}]
  %s1 = inlined_call_operand.vmem [shape: bf16[64,64], index: 1, kind: input, shape index: {}]
  %s2 = inlined_call_operand.vmem [shape: bf16[64,64], index: 2, kind: input, shape index: {}]
  %s3 = inlined_call_operand.vmem [shape: bf16[64,8], index: 3, kind: input, shape index: {}]
  %s4 = inlined_call_operand.vmem [shape: f32[1,8], index: 4, kind: input, shape index: {}]
  %s5 = inlined_call_operand.vmem [shape: bf16[8,64], index: 5, kind: input, shape index: {}]
  %s6 = inlined_call_operand.vmem [shape: f32[8,1], index: 6, kind: input, shape index: {}]
  %s7 = inlined_call_operand.vmem [shape: bf16[32,32], index: 7, kind: input, shape index: {}]
  %s8 = inlined_call_operand.vmem [shape: f32[32,1], index: 8, kind: input, shape index: {}]
  %s9 = inlined_call_operand.<no memory space> [shape: f32[1], index: 9, kind: input, shape index: {}]
  %s10 = inlined_call_operand.vmem [shape: f32[32,128], index: 10, kind: output, shape index: {}, may-alias: {0,10}]
  %s11 = sld [smem:[#allocation0]]
  $region50: #{caa_forward.1} parent=0
    _
  %s13 = ssub.s32 1, %s11
  %s14 = scalar_select 0, %s13, %s11
  %15 = sst [smem:[#allocation2]] %s9
  // Predicated region
  $region2: #{caa_forward.1} parent=0 // pred_check
    _
  $region3: #{caa_forward.1} parent=0 // pred_check_branch
    %17 = sbr.rel (0) target = $region5
  $region4: #{caa_forward.1} parent=0 // pred_region
    _
  $region5: #{caa_forward.1} parent=0 // pred_fallthru
    _
  // Predicated region
  $region6: #{caa_forward.1} parent=0 // pred_check
    _
  $region7: #{caa_forward.1} parent=0 // pred_check_branch
    %19 = sbr.rel (0) target = $region9
  $region8: #{caa_forward.1} parent=0 // pred_region
    _
  $region9: #{caa_forward.1} parent=0 // pred_fallthru
    _
  // Predicated region
  $region10: #{caa_forward.1} parent=0 // pred_check
    _
  $region11: #{caa_forward.1} parent=0 // pred_check_branch
    %21 = sbr.rel (0) target = $region13
  $region12: #{caa_forward.1} parent=0 // pred_region
    _
  $region13: #{caa_forward.1} parent=0 // pred_fallthru
    _
  // Predicated region
  $region14: #{caa_forward.1} parent=0 // pred_check
    _
  $region15: #{caa_forward.1} parent=0 // pred_check_branch
    %23 = sbr.rel (0) target = $region17
  $region16: #{caa_forward.1} parent=0 // pred_region
    _
  $region17: #{caa_forward.1} parent=0 // pred_fallthru
    _
  // Predicated region
  $region18: #{caa_forward.1} parent=0 // pred_check
    _
  $region19: #{caa_forward.1} parent=0 // pred_check_branch
    %25 = sbr.rel (0) target = $region21
  $region20: #{caa_forward.1} parent=0 // pred_region
    _
  $region21: #{caa_forward.1} parent=0 // pred_fallthru
    _
  // Predicated region
  $region22: #{caa_forward.1} parent=0 // pred_check
    _
  $region23: #{caa_forward.1} parent=0 // pred_check_branch
    %27 = sbr.rel (0) target = $region25
  $region24: #{caa_forward.1} parent=0 // pred_region
    _
  $region25: #{caa_forward.1} parent=0 // pred_fallthru
    _
  // Predicated region
  $region26: #{caa_forward.1} parent=0 // pred_check
    _
  $region27: #{caa_forward.1} parent=0 // pred_check_branch
    %29 = sbr.rel (0) target = $region29
  $region28: #{caa_forward.1} parent=0 // pred_region
    _
  $region29: #{caa_forward.1} parent=0 // pred_fallthru
    _
  // Predicated region
  $region30: #{caa_forward.1} parent=0 // pred_check
    _
  $region31: #{caa_forward.1} parent=0 // pred_check_branch
    %31 = sbr.rel (0) target = $region33
  $region32: #{caa_forward.1} parent=0 // pred_region
    _
  $region33: #{caa_forward.1} parent=0 // pred_fallthru
    _
  // Predicated region
  $region34: #{caa_forward.1} parent=0 // pred_check
    _
  $region35: #{caa_forward.1} parent=0 // pred_check_branch
    %33 = sbr.rel (0) target = $region37
  $region36: #{caa_forward.1} parent=0 // pred_region
    _
  $region37: #{caa_forward.1} parent=0 // pred_fallthru
    _
  // Predicated region
  $region38: #{caa_forward.1} parent=0 // pred_check
    _
  $region39: #{caa_forward.1} parent=0 // pred_check_branch
    %35 = sbr.rel (0) target = $region41
  $region40: #{caa_forward.1} parent=0 // pred_region
    _
  $region41: #{caa_forward.1} parent=0 // pred_fallthru
    _
  %s37 = sld [smem:[#allocation2]]
  %v38 = vld [vmem:[%s0] sm:$0xff]
  %v39 = vld [vmem:[%s0 + $0x8] sm:$0xff]
  %v40 = vld [vmem:[%s0 + $0x10] sm:$0xff]
  %v41 = vld [vmem:[%s0 + $0x18] sm:$0xff]
  %v42 = vld [vmem:[%s1] sm:$0xf]
  %v43 = vld [vmem:[%s1 + $0x4] sm:$0xf]
  %v44 = vld [vmem:[%s1 + $0x8] sm:$0xf]
  %v45 = vld [vmem:[%s1 + $0xc] sm:$0xf]
  %v46 = vld [vmem:[%s1 + $0x10] sm:$0xf]
  %v47 = vld [vmem:[%s1 + $0x14] sm:$0xf]
  %v48 = vld [vmem:[%s1 + $0x18] sm:$0xf]
  %v49 = vld [vmem:[%s1 + $0x1c] sm:$0xf]
  %v50 = vld [vmem:[%s3] sm:$0xf]
  %v51 = vld [vmem:[%s3 + $0x4] sm:$0xf]
  %v52 = vld [vmem:[%s3 + $0x8] sm:$0xf]
  %v53 = vld [vmem:[%s3 + $0xc] sm:$0xf]
  %v54 = vld [vmem:[%s3 + $0x10] sm:$0xf]
  %v55 = vld [vmem:[%s3 + $0x14] sm:$0xf]
  %v56 = vld [vmem:[%s3 + $0x18] sm:$0xf]
  %v57 = vld [vmem:[%s3 + $0x1c] sm:$0xf]
  %v58 = vld [vmem:[%s4] sm:$0x1]
  %v60 = vlaneseq
  %v61 = vshrl.u32 %v60, 7
  %v62 = vsub.s32 0, %v61
  %v63 = vrot.slane %v58, %v62
  %v73 = vunpack.c.l.b16 %v42
  %v74 = vunpack.c.l.b16 %v43
  %v75 = vunpack.c.l.b16 %v44
  %v76 = vunpack.c.l.b16 %v45
  %v77 = vunpack.c.l.b16 %v46
  %v78 = vunpack.c.l.b16 %v47
  %v79 = vunpack.c.l.b16 %v48
  %v80 = vunpack.c.l.b16 %v49
  %v81 = vpack.c.b16 %v74, %v73
  %v82 = vpack.c.b16 %v76, %v75
  %v83 = vpack.c.b16 %v78, %v77
  %v84 = vpack.c.b16 %v80, %v79
  %v93 = vunpack.c.l.b16 %v50
  %v94 = vunpack.c.l.b16 %v51
  %v95 = vunpack.c.l.b16 %v52
  %v96 = vunpack.c.l.b16 %v53
  %v97 = vunpack.c.l.b16 %v54
  %v98 = vunpack.c.l.b16 %v55
  %v99 = vunpack.c.l.b16 %v56
  %v100 = vunpack.c.l.b16 %v57
  %v101 = vpack.c.b16 %v94, %v93
  %v102 = vpack.c.b16 %v96, %v95
  %v103 = vpack.c.b16 %v98, %v97
  %v104 = vpack.c.b16 %v100, %v99
  %vm109 = vcmask 523264
  %v111 = vsel %vm109, %v81, 0
  %v114 = vsel %vm109, %v82, 0
  %v117 = vsel %vm109, %v83, 0
  %v120 = vsel %vm109, %v84, 0
  %122 = vmatprep.subr.bf16.mxu0 0
  %123 = vmatpush1.bf16.msra.mxu0 %v101
  %124 = vmatprep.subr.bf16.mxu0 0
  %125 = vmatpush1.bf16.msra.mxu0 %v102
  %126 = vmatprep.subr.bf16.mxu0 0
  %127 = vmatpush1.bf16.msra.mxu0 %v103
  %128 = vmatprep.subr.bf16.mxu0 0
  %129 = vmatpush1.bf16.msra.mxu0 %v104
  %130 = vmatprep.subr.bf16.mxu0 0
  %131 = vmatpush1.bf16.msra.mxu0 0
  %132 = vmatprep.subr.bf16.mxu0 0
  %133 = vmatpush1.bf16.msra.mxu0 0
  %134 = vmatprep.subr.bf16.mxu0 0
  %135 = vmatpush1.bf16.msra.mxu0 0
  %136 = vmatprep.subr.bf16.mxu0 0
  %137 = vmatpush1.bf16.msra.mxu0 0
  %138 = vmatprep.subr.bf16.mxu0 0
  %139 = vmatpush1.bf16.msra.mxu0 0
  %140 = vmatprep.subr.bf16.mxu0 0
  %141 = vmatpush1.bf16.msra.mxu0 0
  %142 = vmatprep.subr.bf16.mxu0 0
  %143 = vmatpush1.bf16.msra.mxu0 0
  %144 = vmatprep.subr.bf16.mxu0 0
  %145 = vmatpush1.bf16.msra.mxu0 0
  %146 = vmatprep.subr.bf16.mxu0 0
  %147 = vmatpush1.bf16.msra.mxu0 0
  %148 = vmatprep.subr.bf16.mxu0 0
  %149 = vmatpush1.bf16.msra.mxu0 0
  %150 = vmatprep.subr.bf16.mxu0 0
  %151 = vmatpush1.bf16.msra.mxu0 0
  %152 = vmatprep.subr.bf16.mxu0 0
  %153 = vmatpush1.bf16.msra.mxu0 0
  %154 = vmatprep.mubr.bf16.mxu0 0
  %155 = vmatmul.mubr.bf16.gmra.mrb[0].mxu0 %v111
  %v156 = vpop.f32.mrb[0].mxu0
  %v157 = vadd.f32 %v63, %v156
  %v158 = vpop.f32.mrb[0].mxu0
  %v159 = vpop.f32.mrb[0].mxu0
  %v160 = vadd.f32 %v63, %v159
  %v161 = vpop.f32.mrb[0].mxu0
  %162 = vmatprep.mubr.bf16.mxu0 0
  %163 = vmatmul.mubr.bf16.gmra.mrb[0].mxu0 %v114
  %v164 = vpop.f32.mrb[0].mxu0
  %v165 = vadd.f32 %v63, %v164
  %v166 = vpop.f32.mrb[0].mxu0
  %v167 = vpop.f32.mrb[0].mxu0
  %v168 = vadd.f32 %v63, %v167
  %v169 = vpop.f32.mrb[0].mxu0
  %170 = vmatprep.mubr.bf16.mxu0 0
  %171 = vmatmul.mubr.bf16.gmra.mrb[0].mxu0 %v117
  %v172 = vpop.f32.mrb[0].mxu0
  %v173 = vadd.f32 %v63, %v172
  %v174 = vpop.f32.mrb[0].mxu0
  %v175 = vpop.f32.mrb[0].mxu0
  %v176 = vadd.f32 %v63, %v175
  %v177 = vpop.f32.mrb[0].mxu0
  %178 = vmatprep.mubr.bf16.mxu0 0
  %179 = vmatmul.mubr.bf16.gmra.mrb[0].mxu0 %v120
  %v180 = vpop.f32.mrb[0].mxu0
  %v181 = vadd.f32 %v63, %v180
  %v182 = vpop.f32.mrb[0].mxu0
  %v183 = vpop.f32.mrb[0].mxu0
  %v184 = vadd.f32 %v63, %v183
  %v185 = vpop.f32.mrb[0].mxu0
  %186 = vdwg.mxu0
  %v187 = vmax.f32 %v157, 0.0
  %v188 = vmax.f32 %v160, 0.0
  %v189 = vmax.f32 %v165, 0.0
  %v190 = vmax.f32 %v168, 0.0
  %v191 = vmax.f32 %v173, 0.0
  %v192 = vmax.f32 %v176, 0.0
  %v193 = vmax.f32 %v181, 0.0
  %v194 = vmax.f32 %v184, 0.0
  %v195 = vld [vmem:[%s5] sm:$0xf]
  %v196 = vld [vmem:[%s2] sm:$0xf]
  %v197 = vld [vmem:[%s2 + $0x4] sm:$0xf]
  %v198 = vld [vmem:[%s2 + $0x8] sm:$0xf]
  %v199 = vld [vmem:[%s2 + $0xc] sm:$0xf]
  %v200 = vld [vmem:[%s2 + $0x10] sm:$0xf]
  %v201 = vld [vmem:[%s2 + $0x14] sm:$0xf]
  %v202 = vld [vmem:[%s2 + $0x18] sm:$0xf]
  %v203 = vld [vmem:[%s2 + $0x1c] sm:$0xf]
  %v204 = vld [vmem:[%s6] sm:$0xff]
  %206 = vset.pattern.permute.xlu0 0
  %207 = vperm.xlu0 %206, %v204
  %v208 = vpop.permute.xlu0 %207
  %v218 = vunpack.c.l.b16 %v196
  %v219 = vunpack.c.l.b16 %v197
  %v220 = vunpack.c.l.b16 %v198
  %v221 = vunpack.c.l.b16 %v199
  %v222 = vunpack.c.l.b16 %v200
  %v223 = vunpack.c.l.b16 %v201
  %v224 = vunpack.c.l.b16 %v202
  %v225 = vunpack.c.l.b16 %v203
  %v226 = vpack.c.b16 %v219, %v218
  %v227 = vpack.c.b16 %v221, %v220
  %v228 = vpack.c.b16 %v223, %v222
  %v229 = vpack.c.b16 %v225, %v224
  %v235 = vsel %vm109, %v195, 0
  %237 = vmatprep.subr.bf16.mxu0 0
  %238 = vmatpush1.bf16.msra.mxu0 %v226
  %239 = vmatprep.subr.bf16.mxu0 0
  %240 = vmatpush1.bf16.msra.mxu0 %v227
  %241 = vmatprep.subr.bf16.mxu0 0
  %242 = vmatpush1.bf16.msra.mxu0 %v228
  %243 = vmatprep.subr.bf16.mxu0 0
  %244 = vmatpush1.bf16.msra.mxu0 %v229
  %245 = vmatprep.subr.bf16.mxu0 0
  %246 = vmatpush1.bf16.msra.mxu0 0
  %247 = vmatprep.subr.bf16.mxu0 0
  %248 = vmatpush1.bf16.msra.mxu0 0
  %249 = vmatprep.subr.bf16.mxu0 0
  %250 = vmatpush1.bf16.msra.mxu0 0
  %251 = vmatprep.subr.bf16.mxu0 0
  %252 = vmatpush1.bf16.msra.mxu0 0
  %253 = vmatprep.subr.bf16.mxu0 0
  %254 = vmatpush1.bf16.msra.mxu0 0
  %255 = vmatprep.subr.bf16.mxu0 0
  %256 = vmatpush1.bf16.msra.mxu0 0
  %257 = vmatprep.subr.bf16.mxu0 0
  %258 = vmatpush1.bf16.msra.mxu0 0
  %259 = vmatprep.subr.bf16.mxu0 0
  %260 = vmatpush1.bf16.msra.mxu0 0
  %261 = vmatprep.subr.bf16.mxu0 0
  %262 = vmatpush1.bf16.msra.mxu0 0
  %263 = vmatprep.subr.bf16.mxu0 0
  %264 = vmatpush1.bf16.msra.mxu0 0
  %265 = vmatprep.subr.bf16.mxu0 0
  %266 = vmatpush1.bf16.msra.mxu0 0
  %267 = vmatprep.subr.bf16.mxu0 0
  %268 = vmatpush1.bf16.msra.mxu0 0
  %269 = vmatprep.mubr.bf16.mxu0 0
  %270 = vmatmul.mubr.bf16.gmra.mrb[0].mxu0 %v235
  %v271 = vpop.f32.mrb[0].mxu0
  %v272 = vadd.f32 %v208, %v271
  %v273 = vpop.f32.mrb[0].mxu0
  %v274 = vpop.f32.mrb[0].mxu0
  %v275 = vpop.f32.mrb[0].mxu0
  %276 = vdwg.mxu0
  %v277 = vmax.f32 %v272, 0.0
  %v278 = vld [vmem:[%s7] sm:$0xf]
  %v279 = vld [vmem:[%s7 + $0x4] sm:$0xf]
  %v280 = vld [vmem:[%s7 + $0x8] sm:$0xf]
  %v281 = vld [vmem:[%s7 + $0xc] sm:$0xf]
  %v282 = vpack.c.bf16 %v39, %v38
  %v283 = vpack.c.bf16 %v41, %v40
  %v284 = vld [vmem:[%s8] sm:$0xff]
  %v285 = vld [vmem:[%s8 + $0x8] sm:$0xff]
  %v286 = vld [vmem:[%s8 + $0x10] sm:$0xff]
  %v287 = vld [vmem:[%s8 + $0x18] sm:$0xff]
  %289 = vset.pattern.permute.xlu0 0
  %290 = vperm.xlu0 %289, %v284
  %v291 = vpop.permute.xlu0 %290
  %294 = vset.pattern.permute.xlu0 0
  %295 = vperm.xlu0 %294, %v285
  %v296 = vpop.permute.xlu0 %295
  %299 = vset.pattern.permute.xlu0 0
  %300 = vperm.xlu0 %299, %v286
  %v301 = vpop.permute.xlu0 %300
  %304 = vset.pattern.permute.xlu0 0
  %305 = vperm.xlu0 %304, %v287
  %v306 = vpop.permute.xlu0 %305
  %v312 = vunpack.c.l.b16 %v278
  %v313 = vunpack.c.l.b16 %v279
  %v314 = vunpack.c.l.b16 %v280
  %v315 = vunpack.c.l.b16 %v281
  %v316 = vpack.c.b16 %v313, %v312
  %v317 = vpack.c.b16 %v315, %v314
  %vm318 = vcmask 261120
  %v320 = vsel %vm318, %v316, 0
  %v323 = vsel %vm318, %v317, 0
  %325 = vmatprep.subr.bf16.mxu0 0
  %326 = vmatpush1.bf16.msra.mxu0 %v282
  %327 = vmatprep.subr.bf16.mxu0 0
  %328 = vmatpush1.bf16.msra.mxu0 %v283
  %329 = vmatprep.subr.bf16.mxu0 0
  %330 = vmatpush1.bf16.msra.mxu0 0
  %331 = vmatprep.subr.bf16.mxu0 0
  %332 = vmatpush1.bf16.msra.mxu0 0
  %333 = vmatprep.subr.bf16.mxu0 0
  %334 = vmatpush1.bf16.msra.mxu0 0
  %335 = vmatprep.subr.bf16.mxu0 0
  %336 = vmatpush1.bf16.msra.mxu0 0
  %337 = vmatprep.subr.bf16.mxu0 0
  %338 = vmatpush1.bf16.msra.mxu0 0
  %339 = vmatprep.subr.bf16.mxu0 0
  %340 = vmatpush1.bf16.msra.mxu0 0
  %341 = vmatprep.subr.bf16.mxu0 0
  %342 = vmatpush1.bf16.msra.mxu0 0
  %343 = vmatprep.subr.bf16.mxu0 0
  %344 = vmatpush1.bf16.msra.mxu0 0
  %345 = vmatprep.subr.bf16.mxu0 0
  %346 = vmatpush1.bf16.msra.mxu0 0
  %347 = vmatprep.subr.bf16.mxu0 0
  %348 = vmatpush1.bf16.msra.mxu0 0
  %349 = vmatprep.subr.bf16.mxu0 0
  %350 = vmatpush1.bf16.msra.mxu0 0
  %351 = vmatprep.subr.bf16.mxu0 0
  %352 = vmatpush1.bf16.msra.mxu0 0
  %353 = vmatprep.subr.bf16.mxu0 0
  %354 = vmatpush1.bf16.msra.mxu0 0
  %355 = vmatprep.subr.bf16.mxu0 0
  %356 = vmatpush1.bf16.msra.mxu0 0
  %357 = vmatprep.mubr.bf16.mxu0 0
  %358 = vmatmul.mubr.bf16.gmra.mrb[0].mxu0 %v320
  %v359 = vpop.f32.mrb[0].mxu0
  %v360 = vadd.f32 %v291, %v359
  %v361 = vpop.f32.mrb[0].mxu0
  %v362 = vpop.f32.mrb[0].mxu0
  %v363 = vadd.f32 %v296, %v362
  %v364 = vpop.f32.mrb[0].mxu0
  %365 = vmatprep.mubr.bf16.mxu0 0
  %366 = vmatmul.mubr.bf16.gmra.mrb[0].mxu0 %v323
  %v367 = vpop.f32.mrb[0].mxu0
  %v368 = vadd.f32 %v301, %v367
  %v369 = vpop.f32.mrb[0].mxu0
  %v370 = vpop.f32.mrb[0].mxu0
  %v371 = vadd.f32 %v306, %v370
  %v372 = vpop.f32.mrb[0].mxu0
  %373 = vdwg.mxu0
  %v374 = vmax.f32 %v360, 0.0
  %v375 = vmax.f32 %v363, 0.0
  %v376 = vmax.f32 %v368, 0.0
  %v377 = vmax.f32 %v371, 0.0
  %v378 = vpack.c.bf16 %v188, %v187
  %v379 = vpack.c.bf16 %v190, %v189
  %v380 = vpack.c.bf16 %v277, %v277
  %vm381 = vcmask 64512
  %v383 = vsel %vm381, %v378, 0
  %v386 = vsel %vm381, %v379, 0
  %vm388 = vcmask 1043456
  %v390 = vsel %vm388, %v380, 0
  %392 = vmatprep.subr.bf16.mxu0 0
  %393 = vmatpush1.bf16.msra.mxu0 %v390
  %394 = vmatprep.subr.bf16.mxu0 0
  %395 = vmatpush1.bf16.msra.mxu0 0
  %396 = vmatprep.subr.bf16.mxu0 0
  %397 = vmatpush1.bf16.msra.mxu0 0
  %398 = vmatprep.subr.bf16.mxu0 0
  %399 = vmatpush1.bf16.msra.mxu0 0
  %400 = vmatprep.subr.bf16.mxu0 0
  %401 = vmatpush1.bf16.msra.mxu0 0
  %402 = vmatprep.subr.bf16.mxu0 0
  %403 = vmatpush1.bf16.msra.mxu0 0
  %404 = vmatprep.subr.bf16.mxu0 0
  %405 = vmatpush1.bf16.msra.mxu0 0
  %406 = vmatprep.subr.bf16.mxu0 0
  %407 = vmatpush1.bf16.msra.mxu0 0
  %408 = vmatprep.subr.bf16.mxu0 0
  %409 = vmatpush1.bf16.msra.mxu0 0
  %410 = vmatprep.subr.bf16.mxu0 0
  %411 = vmatpush1.bf16.msra.mxu0 0
  %412 = vmatprep.subr.bf16.mxu0 0
  %413 = vmatpush1.bf16.msra.mxu0 0
  %414 = vmatprep.subr.bf16.mxu0 0
  %415 = vmatpush1.bf16.msra.mxu0 0
  %416 = vmatprep.subr.bf16.mxu0 0
  %417 = vmatpush1.bf16.msra.mxu0 0
  %418 = vmatprep.subr.bf16.mxu0 0
  %419 = vmatpush1.bf16.msra.mxu0 0
  %420 = vmatprep.subr.bf16.mxu0 0
  %421 = vmatpush1.bf16.msra.mxu0 0
  %422 = vmatprep.subr.bf16.mxu0 0
  %423 = vmatpush1.bf16.msra.mxu0 0
  %424 = vmatprep.mubr.bf16.mxu0 0
  %425 = vmatmul.mubr.bf16.gmra.mrb[0].mxu0 %v383
  %v426 = vpop.f32.mrb[0].mxu0
  %v427 = vadd.f32 0.0, %v426
  %v428 = vpop.f32.mrb[0].mxu0
  %v429 = vpop.f32.mrb[0].mxu0
  %v430 = vadd.f32 0.0, %v429
  %v431 = vpop.f32.mrb[0].mxu0
  %432 = vmatprep.mubr.bf16.mxu0 0
  %433 = vmatmul.mubr.bf16.gmra.mrb[0].mxu0 %v386
  %v434 = vpop.f32.mrb[0].mxu0
  %v435 = vadd.f32 0.0, %v434
  %v436 = vpop.f32.mrb[0].mxu0
  %v437 = vpop.f32.mrb[0].mxu0
  %v438 = vadd.f32 0.0, %v437
  %v439 = vpop.f32.mrb[0].mxu0
  %440 = vdwg.mxu0
  %v441 = vpack.c.bf16 %v192, %v191
  %v442 = vpack.c.bf16 %v194, %v193
  %444 = vrot.lane.b32.xlu0 %v380, 96
  %v445 = vpop.permute.xlu0 %444
  %v447 = vsel %vm381, %v441, 0
  %v450 = vsel %vm381, %v442, 0
  %v453 = vsel %vm388, %v445, 0
  %455 = vmatprep.subr.bf16.mxu0 0
  %456 = vmatpush1.bf16.msra.mxu0 %v453
  %457 = vmatprep.subr.bf16.mxu0 0
  %458 = vmatpush1.bf16.msra.mxu0 0
  %459 = vmatprep.subr.bf16.mxu0 0
  %460 = vmatpush1.bf16.msra.mxu0 0
  %461 = vmatprep.subr.bf16.mxu0 0
  %462 = vmatpush1.bf16.msra.mxu0 0
  %463 = vmatprep.subr.bf16.mxu0 0
  %464 = vmatpush1.bf16.msra.mxu0 0
  %465 = vmatprep.subr.bf16.mxu0 0
  %466 = vmatpush1.bf16.msra.mxu0 0
  %467 = vmatprep.subr.bf16.mxu0 0
  %468 = vmatpush1.bf16.msra.mxu0 0
  %469 = vmatprep.subr.bf16.mxu0 0
  %470 = vmatpush1.bf16.msra.mxu0 0
  %471 = vmatprep.subr.bf16.mxu0 0
  %472 = vmatpush1.bf16.msra.mxu0 0
  %473 = vmatprep.subr.bf16.mxu0 0
  %474 = vmatpush1.bf16.msra.mxu0 0
  %475 = vmatprep.subr.bf16.mxu0 0
  %476 = vmatpush1.bf16.msra.mxu0 0
  %477 = vmatprep.subr.bf16.mxu0 0
  %478 = vmatpush1.bf16.msra.mxu0 0
  %479 = vmatprep.subr.bf16.mxu0 0
  %480 = vmatpush1.bf16.msra.mxu0 0
  %481 = vmatprep.subr.bf16.mxu0 0
  %482 = vmatpush1.bf16.msra.mxu0 0
  %483 = vmatprep.subr.bf16.mxu0 0
  %484 = vmatpush1.bf16.msra.mxu0 0
  %485 = vmatprep.subr.bf16.mxu0 0
  %486 = vmatpush1.bf16.msra.mxu0 0
  %487 = vmatprep.mubr.bf16.mxu0 0
  %488 = vmatmul.mubr.bf16.gmra.mrb[0].mxu0 %v447
  %v489 = vpop.f32.mrb[0].mxu0
  %v490 = vadd.f32 0.0, %v489
  %v491 = vpop.f32.mrb[0].mxu0
  %v492 = vpop.f32.mrb[0].mxu0
  %v493 = vadd.f32 0.0, %v492
  %v494 = vpop.f32.mrb[0].mxu0
  %495 = vmatprep.mubr.bf16.mxu0 0
  %496 = vmatmul.mubr.bf16.gmra.mrb[0].mxu0 %v450
  %v497 = vpop.f32.mrb[0].mxu0
  %v498 = vadd.f32 0.0, %v497
  %v499 = vpop.f32.mrb[0].mxu0
  %v500 = vpop.f32.mrb[0].mxu0
  %v501 = vadd.f32 0.0, %v500
  %v502 = vpop.f32.mrb[0].mxu0
  %503 = vdwg.mxu0
  %v504 = vsel %vm318, %v427, inf
  %505 = vmin.xlane.f32.xlu0 %v504
  %v506 = vpop.xlane.xlu0 %505
  %v507 = vsel %vm318, %v430, inf
  %508 = vmin.xlane.f32.xlu0 %v507
  %v509 = vpop.xlane.xlu0 %508
  %v510 = vsel %vm318, %v435, inf
  %511 = vmin.xlane.f32.xlu0 %v510
  %v512 = vpop.xlane.xlu0 %511
  %v513 = vsel %vm318, %v438, inf
  %514 = vmin.xlane.f32.xlu0 %v513
  %v515 = vpop.xlane.xlu0 %514
  %v516 = vsel %vm318, %v490, inf
  %517 = vmin.xlane.f32.xlu0 %v516
  %v518 = vpop.xlane.xlu0 %517
  %v519 = vsel %vm318, %v493, inf
  %520 = vmin.xlane.f32.xlu0 %v519
  %v521 = vpop.xlane.xlu0 %520
  %v522 = vsel %vm318, %v498, inf
  %523 = vmin.xlane.f32.xlu0 %v522
  %v524 = vpop.xlane.xlu0 %523
  %v525 = vsel %vm318, %v501, inf
  %526 = vmin.xlane.f32.xlu0 %v525
  %v527 = vpop.xlane.xlu0 %526
  %v528 = vsub.f32 %v506, %v427
  %v529 = vsub.f32 %v509, %v430
  %v530 = vsub.f32 %v512, %v435
  %v531 = vsub.f32 %v515, %v438
  %v532 = vsub.f32 %v518, %v490
  %v533 = vsub.f32 %v521, %v493
  %v534 = vsub.f32 %v524, %v498
  %v535 = vsub.f32 %v527, %v501
  %v536 = vmul.f32 %v528, 1.442695
  %v537 = vpow.pop %v536
  %v538 = vmul.f32 %v529, 1.442695
  %v539 = vpow.pop %v538
  %v540 = vmul.f32 %v530, 1.442695
  %v541 = vpow.pop %v540
  %v542 = vmul.f32 %v531, 1.442695
  %v543 = vpow.pop %v542
  %v544 = vmul.f32 %v532, 1.442695
  %v545 = vpow.pop %v544
  %v546 = vmul.f32 %v533, 1.442695
  %v547 = vpow.pop %v546
  %v548 = vmul.f32 %v534, 1.442695
  %v549 = vpow.pop %v548
  %v550 = vmul.f32 %v535, 1.442695
  %v551 = vpow.pop %v550
  %v552 = vsel %vm318, %v537, 0.0
  %553 = vadd.xlane.f32.xlu0 %v552
  %v554 = vpop.xlane.xlu0 %553
  %v555 = vsel %vm318, %v539, 0.0
  %556 = vadd.xlane.f32.xlu0 %v555
  %v557 = vpop.xlane.xlu0 %556
  %v558 = vsel %vm318, %v541, 0.0
  %559 = vadd.xlane.f32.xlu0 %v558
  %v560 = vpop.xlane.xlu0 %559
  %v561 = vsel %vm318, %v543, 0.0
  %562 = vadd.xlane.f32.xlu0 %v561
  %v563 = vpop.xlane.xlu0 %562
  %v564 = vsel %vm318, %v545, 0.0
  %565 = vadd.xlane.f32.xlu0 %v564
  %v566 = vpop.xlane.xlu0 %565
  %v567 = vsel %vm318, %v547, 0.0
  %568 = vadd.xlane.f32.xlu0 %v567
  %v569 = vpop.xlane.xlu0 %568
  %v570 = vsel %vm318, %v549, 0.0
  %571 = vadd.xlane.f32.xlu0 %v570
  %v572 = vpop.xlane.xlu0 %571
  %v573 = vsel %vm318, %v551, 0.0
  %574 = vadd.xlane.f32.xlu0 %v573
  %v575 = vpop.xlane.xlu0 %574
  %v576 = vrcp.pop %v554
  %v577 = vrcp.pop %v557
  %v578 = vrcp.pop %v560
  %v579 = vrcp.pop %v563
  %v580 = vrcp.pop %v566
  %v581 = vrcp.pop %v569
  %v582 = vrcp.pop %v572
  %v583 = vrcp.pop %v575
  %v584 = vmul.f32 %v537, %v576
  %v585 = vmul.f32 %v539, %v577
  %v586 = vmul.f32 %v541, %v578
  %v587 = vmul.f32 %v543, %v579
  %v588 = vmul.f32 %v545, %v580
  %v589 = vmul.f32 %v547, %v581
  %v590 = vmul.f32 %v549, %v582
  %v591 = vmul.f32 %v551, %v583
  %v592 = vpack.c.bf16 %v585, %v584
  %v593 = vpack.c.bf16 %v587, %v586
  %v594 = vpack.c.bf16 %v589, %v588
  %v595 = vpack.c.bf16 %v591, %v590
  %v596 = vpack.c.bf16 %v375, %v374
  %v597 = vpack.c.bf16 %v377, %v376
  %v599 = vsel %vm318, %v592, 0
  %v602 = vsel %vm318, %v593, 0
  %604 = vmatprep.subr.bf16.mxu0 0
  %605 = vmatpush1.bf16.msra.mxu0 %v596
  %606 = vmatprep.subr.bf16.mxu0 0
  %607 = vmatpush1.bf16.msra.mxu0 %v597
  %608 = vmatprep.subr.bf16.mxu0 0
  %609 = vmatpush1.bf16.msra.mxu0 0
  %610 = vmatprep.subr.bf16.mxu0 0
  %611 = vmatpush1.bf16.msra.mxu0 0
  %612 = vmatprep.subr.bf16.mxu0 0
  %613 = vmatpush1.bf16.msra.mxu0 0
  %614 = vmatprep.subr.bf16.mxu0 0
  %615 = vmatpush1.bf16.msra.mxu0 0
  %616 = vmatprep.subr.bf16.mxu0 0
  %617 = vmatpush1.bf16.msra.mxu0 0
  %618 = vmatprep.subr.bf16.mxu0 0
  %619 = vmatpush1.bf16.msra.mxu0 0
  %620 = vmatprep.subr.bf16.mxu0 0
  %621 = vmatpush1.bf16.msra.mxu0 0
  %622 = vmatprep.subr.bf16.mxu0 0
  %623 = vmatpush1.bf16.msra.mxu0 0
  %624 = vmatprep.subr.bf16.mxu0 0
  %625 = vmatpush1.bf16.msra.mxu0 0
  %626 = vmatprep.subr.bf16.mxu0 0
  %627 = vmatpush1.bf16.msra.mxu0 0
  %628 = vmatprep.subr.bf16.mxu0 0
  %629 = vmatpush1.bf16.msra.mxu0 0
  %630 = vmatprep.subr.bf16.mxu0 0
  %631 = vmatpush1.bf16.msra.mxu0 0
  %632 = vmatprep.subr.bf16.mxu0 0
  %633 = vmatpush1.bf16.msra.mxu0 0
  %634 = vmatprep.subr.bf16.mxu0 0
  %635 = vmatpush1.bf16.msra.mxu0 0
  %636 = vmatprep.mubr.bf16.mxu0 0
  %637 = vmatmul.mubr.bf16.gmra.mrb[0].mxu0 %v599
  %v638 = vpop.f32.mrb[0].mxu0
  %v639 = vadd.f32 0.0, %v638
  %v640 = vpop.f32.mrb[0].mxu0
  %v641 = vpop.f32.mrb[0].mxu0
  %v642 = vadd.f32 0.0, %v641
  %v643 = vpop.f32.mrb[0].mxu0
  %644 = vmatprep.mubr.bf16.mxu0 0
  %645 = vmatmul.mubr.bf16.gmra.mrb[0].mxu0 %v602
  %v646 = vpop.f32.mrb[0].mxu0
  %v647 = vadd.f32 0.0, %v646
  %v648 = vpop.f32.mrb[0].mxu0
  %v649 = vpop.f32.mrb[0].mxu0
  %v650 = vadd.f32 0.0, %v649
  %v651 = vpop.f32.mrb[0].mxu0
  %652 = vdwg.mxu0
  %655 = vrot.lane.b32.xlu0 %v596, 64
  %v656 = vpop.permute.xlu0 %655
  %657 = vrot.lane.b32.xlu0 %v597, 64
  %v658 = vpop.permute.xlu0 %657
  %v662 = vsel %vm318, %v594, 0
  %v665 = vsel %vm318, %v595, 0
  %667 = vmatprep.subr.bf16.mxu0 0
  %668 = vmatpush1.bf16.msra.mxu0 %v656
  %669 = vmatprep.subr.bf16.mxu0 0
  %670 = vmatpush1.bf16.msra.mxu0 %v658
  %671 = vmatprep.subr.bf16.mxu0 0
  %672 = vmatpush1.bf16.msra.mxu0 0
  %673 = vmatprep.subr.bf16.mxu0 0
  %674 = vmatpush1.bf16.msra.mxu0 0
  %675 = vmatprep.subr.bf16.mxu0 0
  %676 = vmatpush1.bf16.msra.mxu0 0
  %677 = vmatprep.subr.bf16.mxu0 0
  %678 = vmatpush1.bf16.msra.mxu0 0
  %679 = vmatprep.subr.bf16.mxu0 0
  %680 = vmatpush1.bf16.msra.mxu0 0
  %681 = vmatprep.subr.bf16.mxu0 0
  %682 = vmatpush1.bf16.msra.mxu0 0
  %683 = vmatprep.subr.bf16.mxu0 0
  %684 = vmatpush1.bf16.msra.mxu0 0
  %685 = vmatprep.subr.bf16.mxu0 0
  %686 = vmatpush1.bf16.msra.mxu0 0
  %687 = vmatprep.subr.bf16.mxu0 0
  %688 = vmatpush1.bf16.msra.mxu0 0
  %689 = vmatprep.subr.bf16.mxu0 0
  %690 = vmatpush1.bf16.msra.mxu0 0
  %691 = vmatprep.subr.bf16.mxu0 0
  %692 = vmatpush1.bf16.msra.mxu0 0
  %693 = vmatprep.subr.bf16.mxu0 0
  %694 = vmatpush1.bf16.msra.mxu0 0
  %695 = vmatprep.subr.bf16.mxu0 0
  %696 = vmatpush1.bf16.msra.mxu0 0
  %697 = vmatprep.subr.bf16.mxu0 0
  %698 = vmatpush1.bf16.msra.mxu0 0
  %699 = vmatprep.mubr.bf16.mxu0 0
  %700 = vmatmul.mubr.bf16.gmra.mrb[0].mxu0 %v662
  %v701 = vpop.f32.mrb[0].mxu0
  %v702 = vadd.f32 0.0, %v701
  %v703 = vpop.f32.mrb[0].mxu0
  %v704 = vpop.f32.mrb[0].mxu0
  %v705 = vadd.f32 0.0, %v704
  %v706 = vpop.f32.mrb[0].mxu0
  %707 = vmatprep.mubr.bf16.mxu0 0
  %708 = vmatmul.mubr.bf16.gmra.mrb[0].mxu0 %v665
  %v709 = vpop.f32.mrb[0].mxu0
  %v710 = vadd.f32 0.0, %v709
  %v711 = vpop.f32.mrb[0].mxu0
  %v712 = vpop.f32.mrb[0].mxu0
  %v713 = vadd.f32 0.0, %v712
  %v714 = vpop.f32.mrb[0].mxu0
  %715 = vdwg.mxu0
  %720 = vrot.lane.b32.xlu0 %v702, 64
  %v721 = vpop.permute.xlu0 %720
  %722 = vrot.lane.b32.xlu0 %v705, 64
  %v723 = vpop.permute.xlu0 %722
  %724 = vrot.lane.b32.xlu0 %v710, 64
  %v725 = vpop.permute.xlu0 %724
  %726 = vrot.lane.b32.xlu0 %v713, 64
  %v727 = vpop.permute.xlu0 %726
  %v732 = vsel %vm109, %v639, %v721
  %v733 = vsel %vm109, %v642, %v723
  %v734 = vsel %vm109, %v647, %v725
  %v735 = vsel %vm109, %v650, %v727
  %v736 = vstv %s37
  %v737 = vmul.f32 %v736, %v732
  %v738 = vmul.f32 %v736, %v733
  %v739 = vmul.f32 %v736, %v734
  %v740 = vmul.f32 %v736, %v735
  %v741 = vadd.f32 %v737, %v38
  %v742 = vadd.f32 %v738, %v39
  %v743 = vadd.f32 %v739, %v40
  %v744 = vadd.f32 %v740, %v41
  %745 = vst [vmem:[%s10] sm:$0xff] %v741
  %746 = vst [vmem:[%s10 + $0x8] sm:$0xff] %v742
  %747 = vst [vmem:[%s10 + $0x10] sm:$0xff] %v743
  %748 = vst [vmem:[%s10 + $0x18] sm:$0xff] %v744
  // Predicated region
  $region42: #{caa_forward.1} parent=0 // pred_check
    _
  $region43: #{caa_forward.1} parent=0 // pred_check_branch
    %750 = sbr.rel (0) target = $region45
  $region44: #{caa_forward.1} parent=0 // pred_region
    _
  $region45: #{caa_forward.1} parent=0 // pred_fallthru
    _
  // Predicated region
  $region46: #{caa_forward.1} parent=0 // pred_check
    _
  $region47: #{caa_forward.1} parent=0 // pred_check_branch
    %752 = sbr.rel (0) target = $region49
  $region48: #{caa_forward.1} parent=0 // pred_region
    _
  $region49: #{caa_forward.1} parent=0 // pred_fallthru
    _

</llo_original>
